<compile_context>
chip_gen: v6e
topology: v6e:2x2x1
jax: 0.10.0
libtpu: 0.0.40
codegen_flags: <defaults>
</compile_context>

<pallas_src>
import jax
import jax.numpy as jnp
from jax.experimental import pallas as pl
from jax.experimental.pallas import tpu as pltpu

NEG_SLOPE = 0.01   # nn.LeakyReLU() default
LANE = 128         # TPU lane width
SUBLANE = 8        # TPU sublane width


def _round_up(x, m):
    return ((x + m - 1) // m) * m


def _leaky_relu(x):
    return jnp.where(x > 0, x, NEG_SLOPE * x)


def dqn_mlp_kernel(path_ref, errs_ref, pts_ref,
                   w1p_ref, w1e_ref, w1q_ref, b1_ref,
                   w2_ref, b2_ref, w3_ref, b3_ref, o_ref):
    """Fused 3-layer MLP over one batch tile.

    fc1's input concat is fused via the row-split of its weight.  Matmuls run
    bf16 x bf16 on the MXU with f32 accumulation; bias adds and leaky_relu are
    computed in f32 on the VPU.
    """
    # fc1: path@W1[:P] + errs@W1[P:P+E] + points@W1[P+E:]   (fused concat)
    h1 = jnp.dot(path_ref[...], w1p_ref[...], preferred_element_type=jnp.float32)
    h1 = h1 + jnp.dot(errs_ref[...], w1e_ref[...], preferred_element_type=jnp.float32)
    h1 = h1 + jnp.dot(pts_ref[...], w1q_ref[...], preferred_element_type=jnp.float32)
    h1 = _leaky_relu(h1 + b1_ref[...])

    # fc2
    h2 = jnp.dot(h1.astype(w2_ref.dtype), w2_ref[...],
                 preferred_element_type=jnp.float32)
    h2 = _leaky_relu(h2 + b2_ref[...])

    # fc3 (output features zero-padded to a 128-lane multiple -> dense stores)
    out = jnp.dot(h2.astype(w3_ref.dtype), w3_ref[...],
                  preferred_element_type=jnp.float32)
    o_ref[...] = (out + b3_ref[...]).astype(o_ref.dtype)


def prepare_params(params, path_dim, errs_dim):
    """One-time prep: split fc1's weight by input segment, cast weights to
    bf16, keep biases f32, zero-pad fc3's output features to a lane multiple."""
    w1, b1, w2, b2, w3, b3 = params
    actions = w3.shape[1]
    a_pad = max(LANE, _round_up(actions, LANE))

    w1p = w1[:path_dim].astype(jnp.bfloat16)
    w1e = w1[path_dim:path_dim + errs_dim].astype(jnp.bfloat16)
    w1q = w1[path_dim + errs_dim:].astype(jnp.bfloat16)

    w3_pad = jnp.zeros((w3.shape[0], a_pad), jnp.bfloat16)
    w3_pad = w3_pad.at[:, :actions].set(w3.astype(jnp.bfloat16))
    b3_pad = jnp.zeros((1, a_pad), jnp.float32).at[:, :actions].set(
        b3.astype(jnp.float32))

    prepared = (w1p, w1e, w1q, b1.astype(jnp.float32),
                w2.astype(jnp.bfloat16), b2.astype(jnp.float32),
                w3_pad, b3_pad)
    return prepared, actions


def deep_q_forward(path, errs, points, prepared, actions, *, tb=256):
    """Batch-tiled fused MLP.  With tb=256 the f32 [tb,256] intermediates plus
    bf16 weights (~150 KiB) sit far under even the v7x 32 MiB scoped-VMEM
    default, so no vmem_limit override is needed."""
    w1p, w1e, w1q, b1, w2, b2, w3, b3 = prepared
    B = path.shape[0]
    P = w1p.shape[0]
    E = w1e.shape[0]
    Q = w1q.shape[0]
    a_pad = w3.shape[1]

    # Adapt the batch tile: small requests don't pad all the way to 256 rows,
    # large batches keep the big tile for MXU utilization.
    tb = min(tb, max(SUBLANE, _round_up(B, SUBLANE)))
    b_pad = _round_up(B, tb)

    def prep_in(x, feat):
        assert x.shape == (B, feat)
        if b_pad != B:
            x = jnp.pad(x, ((0, b_pad - B), (0, 0)))
        return x.astype(jnp.bfloat16)

    path_b = prep_in(path, P)
    errs_b = prep_in(errs, E)
    pts_b = prep_in(points, Q)

    def batch_spec(feat):
        return pl.BlockSpec((tb, feat), lambda i: (i, 0))

    def resident(shape):
        # Same block index every grid step -> stays VMEM-resident across steps.
        return pl.BlockSpec(shape, lambda i: (0, 0))

    out_pad = pl.pallas_call(
        dqn_mlp_kernel,
        out_shape=jax.ShapeDtypeStruct((b_pad, a_pad), jnp.float32),
        grid=(b_pad // tb,),
        in_specs=[
            batch_spec(P), batch_spec(E), batch_spec(Q),
            resident(w1p.shape), resident(w1e.shape), resident(w1q.shape),
            resident(b1.shape),
            resident(w2.shape), resident(b2.shape),
            resident(w3.shape), resident(b3.shape),
        ],
        out_specs=pl.BlockSpec((tb, a_pad), lambda i: (i, 0)),
        compiler_params=pltpu.CompilerParams(
            dimension_semantics=("parallel",)),
    )(path_b, errs_b, pts_b, w1p, w1e, w1q, b1, w2, b2, w3, b3)

    return out_pad[:B, :actions]


def init_params(key, state_dim, actions, hidden=256):
    """Deterministic synthetic init (PyTorch-like uniform fan-in scaling)."""
    ks = jax.random.split(key, 6)

    def linear(kw, kb, fan_in, fan_out):
        bound = 1.0 / float(jnp.sqrt(fan_in))
        w = jax.random.uniform(kw, (fan_in, fan_out), jnp.float32, -bound, bound)
        b = jax.random.uniform(kb, (1, fan_out), jnp.float32, -bound, bound)
        return w, b

    w1, b1 = linear(ks[0], ks[1], state_dim, hidden)
    w2, b2 = linear(ks[2], ks[3], hidden, hidden)
    w3, b3 = linear(ks[4], ks[5], hidden, actions)
    return (w1, b1, w2, b2, w3, b3)


def reference_forward(path, errs, points, params):
    """Pure-JAX f32 reference for the correctness check."""
    w1, b1, w2, b2, w3, b3 = params
    x = jnp.concatenate([path, errs, points], axis=1)
    h = jax.nn.leaky_relu(x @ w1 + b1, NEG_SLOPE)
    h = jax.nn.leaky_relu(h @ w2 + b2, NEG_SLOPE)
    return h @ w3 + b3


if __name__ == "__main__":
    # Small shapes: batch=2; path/errs/points feature dims 8/4/4 -> state_dim=16.
    # (In real DQN training the caller should batch requests so B >= 128 to
    # actually fill the MXU; the kernel handles any B via padding.)
    B, PATH_D, ERR_D, PTS_D, ACTIONS = 2, 8, 4, 4, 4
    state_dim = PATH_D + ERR_D + PTS_D

    key = jax.random.PRNGKey(0)
    k_path, k_errs, k_pts, k_params = jax.random.split(key, 4)

    path = jax.random.normal(k_path, (B, PATH_D), jnp.float32)
    errs = jax.random.normal(k_errs, (B, ERR_D), jnp.float32)
    points = jax.random.normal(k_pts, (B, PTS_D), jnp.float32)

    params = init_params(k_params, state_dim, ACTIONS)
    prepared, actions = prepare_params(params, PATH_D, ERR_D)

    out = deep_q_forward(path, errs, points, prepared, actions)
    out = jax.block_until_ready(out)

    ref = reference_forward(path, errs, points, params)
    assert out.shape == (B, ACTIONS), out.shape
    # bf16 matmul inputs with f32 accumulation -> loosened tolerance vs f32 ref.
    assert jnp.allclose(out, ref, atol=5e-2, rtol=5e-2), (out, ref)

    print("KERNEL_OK")
</pallas_src>

<mosaic_0001>
module attributes {stable_mosaic.version = 11 : i64} {
  func.func @dqn_mlp_kernel(%arg0: i32, %arg1: memref<8x8xbf16, #tpu.memory_space<vmem>>, %arg2: memref<8x4xbf16, #tpu.memory_space<vmem>>, %arg3: memref<8x4xbf16, #tpu.memory_space<vmem>>, %arg4: memref<8x256xbf16, #tpu.memory_space<vmem>>, %arg5: memref<4x256xbf16, #tpu.memory_space<vmem>>, %arg6: memref<4x256xbf16, #tpu.memory_space<vmem>>, %arg7: memref<1x256xf32, #tpu.memory_space<vmem>>, %arg8: memref<256x256xbf16, #tpu.memory_space<vmem>>, %arg9: memref<1x256xf32, #tpu.memory_space<vmem>>, %arg10: memref<256x128xbf16, #tpu.memory_space<vmem>>, %arg11: memref<1x128xf32, #tpu.memory_space<vmem>>, %arg12: memref<8x128xf32, #tpu.memory_space<vmem>>) attributes {dimension_semantics = [#tpu.dimension_semantics<parallel>], iteration_bounds = array<i64: 1>, scalar_prefetch = 0 : i64, scratch_operands = 0 : i64, tpu.core_type = #tpu.core_type<tc>, window_params = [{transform_indices = @transform_0, window_bounds = array<i64: 8, 8>}, {transform_indices = @transform_1, window_bounds = array<i64: 8, 4>}, {transform_indices = @transform_2, window_bounds = array<i64: 8, 4>}, {pipeline_mode = #tpu.pipeline_mode<synchronous>, transform_indices = @transform_3, window_bounds = array<i64: 8, 256>}, {pipeline_mode = #tpu.pipeline_mode<synchronous>, transform_indices = @transform_4, window_bounds = array<i64: 4, 256>}, {pipeline_mode = #tpu.pipeline_mode<synchronous>, transform_indices = @transform_5, window_bounds = array<i64: 4, 256>}, {pipeline_mode = #tpu.pipeline_mode<synchronous>, transform_indices = @transform_6, window_bounds = array<i64: 1, 256>}, {pipeline_mode = #tpu.pipeline_mode<synchronous>, transform_indices = @transform_7, window_bounds = array<i64: 256, 256>}, {pipeline_mode = #tpu.pipeline_mode<synchronous>, transform_indices = @transform_8, window_bounds = array<i64: 1, 256>}, {pipeline_mode = #tpu.pipeline_mode<synchronous>, transform_indices = @transform_9, window_bounds = array<i64: 256, 128>}, {pipeline_mode = #tpu.pipeline_mode<synchronous>, transform_indices = @transform_10, window_bounds = array<i64: 1, 128>}, {transform_indices = @transform_11, window_bounds = array<i64: 8, 128>}]} {
    %c0 = arith.constant 0 : index
    %c0_0 = arith.constant 0 : index
    %0 = vector.load %arg1[%c0, %c0_0] : memref<8x8xbf16, #tpu.memory_space<vmem>>, vector<8x8xbf16>
    %c0_1 = arith.constant 0 : index
    %c0_2 = arith.constant 0 : index
    %1 = vector.load %arg4[%c0_1, %c0_2] : memref<8x256xbf16, #tpu.memory_space<vmem>>, vector<8x256xbf16>
    %cst = arith.constant dense<0.000000e+00> : vector<8x256xf32>
    %2 = tpu.matmul %0, %1, %cst {dimension_numbers = #tpu.dot_dimension_numbers<[1], [0], [0], [1], [0, 0, 1, 1], [], []>} : vector<8x8xbf16>, vector<8x256xbf16>, vector<8x256xf32> -> vector<8x256xf32>
    %c0_3 = arith.constant 0 : index
    %c0_4 = arith.constant 0 : index
    %3 = vector.load %arg2[%c0_3, %c0_4] : memref<8x4xbf16, #tpu.memory_space<vmem>>, vector<8x4xbf16>
    %c0_5 = arith.constant 0 : index
    %c0_6 = arith.constant 0 : index
    %4 = vector.load %arg5[%c0_5, %c0_6] : memref<4x256xbf16, #tpu.memory_space<vmem>>, vector<4x256xbf16>
    %cst_7 = arith.constant dense<0.000000e+00> : vector<8x256xf32>
    %5 = tpu.matmul %3, %4, %cst_7 {dimension_numbers = #tpu.dot_dimension_numbers<[1], [0], [0], [1], [0, 0, 1, 1], [], []>} : vector<8x4xbf16>, vector<4x256xbf16>, vector<8x256xf32> -> vector<8x256xf32>
    %6 = arith.addf %2, %5 : vector<8x256xf32>
    %c0_8 = arith.constant 0 : index
    %c0_9 = arith.constant 0 : index
    %7 = vector.load %arg3[%c0_8, %c0_9] : memref<8x4xbf16, #tpu.memory_space<vmem>>, vector<8x4xbf16>
    %c0_10 = arith.constant 0 : index
    %c0_11 = arith.constant 0 : index
    %8 = vector.load %arg6[%c0_10, %c0_11] : memref<4x256xbf16, #tpu.memory_space<vmem>>, vector<4x256xbf16>
    %cst_12 = arith.constant dense<0.000000e+00> : vector<8x256xf32>
    %9 = tpu.matmul %7, %8, %cst_12 {dimension_numbers = #tpu.dot_dimension_numbers<[1], [0], [0], [1], [0, 0, 1, 1], [], []>} : vector<8x4xbf16>, vector<4x256xbf16>, vector<8x256xf32> -> vector<8x256xf32>
    %10 = arith.addf %6, %9 : vector<8x256xf32>
    %c0_13 = arith.constant 0 : index
    %c0_14 = arith.constant 0 : index
    %11 = vector.load %arg7[%c0_13, %c0_14] : memref<1x256xf32, #tpu.memory_space<vmem>>, vector<1x256xf32>
    %12 = vector.broadcast %11 : vector<1x256xf32> to vector<8x256xf32>
    %13 = arith.addf %10, %12 : vector<8x256xf32>
    %cst_15 = arith.constant 0.000000e+00 : f32
    %14 = vector.broadcast %cst_15 : f32 to vector<8x256xf32>
    %15 = arith.cmpf ogt, %13, %14 : vector<8x256xf32>
    %cst_16 = arith.constant 0.00999999977 : f32
    %16 = vector.broadcast %cst_16 : f32 to vector<8x256xf32>
    %17 = arith.mulf %16, %13 : vector<8x256xf32>
    %18 = arith.select %15, %13, %17 : vector<8x256xi1>, vector<8x256xf32>
    %19 = arith.truncf %18 : vector<8x256xf32> to vector<8x256xbf16>
    %c0_17 = arith.constant 0 : index
    %c0_18 = arith.constant 0 : index
    %20 = vector.load %arg8[%c0_17, %c0_18] : memref<256x256xbf16, #tpu.memory_space<vmem>>, vector<256x256xbf16>
    %cst_19 = arith.constant dense<0.000000e+00> : vector<8x256xf32>
    %21 = tpu.matmul %19, %20, %cst_19 {dimension_numbers = #tpu.dot_dimension_numbers<[1], [0], [0], [1], [0, 0, 1, 1], [], []>} : vector<8x256xbf16>, vector<256x256xbf16>, vector<8x256xf32> -> vector<8x256xf32>
    %c0_20 = arith.constant 0 : index
    %c0_21 = arith.constant 0 : index
    %22 = vector.load %arg9[%c0_20, %c0_21] : memref<1x256xf32, #tpu.memory_space<vmem>>, vector<1x256xf32>
    %23 = vector.broadcast %22 : vector<1x256xf32> to vector<8x256xf32>
    %24 = arith.addf %21, %23 : vector<8x256xf32>
    %cst_22 = arith.constant 0.000000e+00 : f32
    %25 = vector.broadcast %cst_22 : f32 to vector<8x256xf32>
    %26 = arith.cmpf ogt, %24, %25 : vector<8x256xf32>
    %cst_23 = arith.constant 0.00999999977 : f32
    %27 = vector.broadcast %cst_23 : f32 to vector<8x256xf32>
    %28 = arith.mulf %27, %24 : vector<8x256xf32>
    %29 = arith.select %26, %24, %28 : vector<8x256xi1>, vector<8x256xf32>
    %30 = arith.truncf %29 : vector<8x256xf32> to vector<8x256xbf16>
    %c0_24 = arith.constant 0 : index
    %c0_25 = arith.constant 0 : index
    %31 = vector.load %arg10[%c0_24, %c0_25] : memref<256x128xbf16, #tpu.memory_space<vmem>>, vector<256x128xbf16>
    %cst_26 = arith.constant dense<0.000000e+00> : vector<8x128xf32>
    %32 = tpu.matmul %30, %31, %cst_26 {dimension_numbers = #tpu.dot_dimension_numbers<[1], [0], [0], [1], [0, 0, 1, 1], [], []>} : vector<8x256xbf16>, vector<256x128xbf16>, vector<8x128xf32> -> vector<8x128xf32>
    %c0_27 = arith.constant 0 : index
    %c0_28 = arith.constant 0 : index
    %33 = vector.load %arg11[%c0_27, %c0_28] : memref<1x128xf32, #tpu.memory_space<vmem>>, vector<1x128xf32>
    %34 = vector.broadcast %33 : vector<1x128xf32> to vector<8x128xf32>
    %35 = arith.addf %32, %34 : vector<8x128xf32>
    %c0_29 = arith.constant 0 : index
    %c0_30 = arith.constant 0 : index
    %36 = vector.load %arg12[%c0_29, %c0_30] : memref<8x128xf32, #tpu.memory_space<vmem>>, vector<8x128xf32>
    tpu.vector_store %arg12[%c0_29, %c0_30], %35 {strides = array<i32>} : memref<8x128xf32, #tpu.memory_space<vmem>>, vector<8x128xf32>,
    return
  }
  func.func @transform_0(%arg0: i32) -> (i32, i32) {
    %c0_i32 = arith.constant 0 : i32
    %c0_i32_0 = arith.constant 0 : i32
    return %arg0, %c0_i32 : i32, i32
  }
  func.func @transform_1(%arg0: i32) -> (i32, i32) {
    %c0_i32 = arith.constant 0 : i32
    %c0_i32_0 = arith.constant 0 : i32
    return %arg0, %c0_i32 : i32, i32
  }
  func.func @transform_2(%arg0: i32) -> (i32, i32) {
    %c0_i32 = arith.constant 0 : i32
    %c0_i32_0 = arith.constant 0 : i32
    return %arg0, %c0_i32 : i32, i32
  }
  func.func @transform_3(%arg0: i32) -> (i32, i32) {
    %c0_i32 = arith.constant 0 : i32
    %c0_i32_0 = arith.constant 0 : i32
    %c0_i32_1 = arith.constant 0 : i32
    return %c0_i32, %c0_i32_0 : i32, i32
  }
  func.func @transform_4(%arg0: i32) -> (i32, i32) {
    %c0_i32 = arith.constant 0 : i32
    %c0_i32_0 = arith.constant 0 : i32
    %c0_i32_1 = arith.constant 0 : i32
    return %c0_i32, %c0_i32_0 : i32, i32
  }
  func.func @transform_5(%arg0: i32) -> (i32, i32) {
    %c0_i32 = arith.constant 0 : i32
    %c0_i32_0 = arith.constant 0 : i32
    %c0_i32_1 = arith.constant 0 : i32
    return %c0_i32, %c0_i32_0 : i32, i32
  }
  func.func @transform_6(%arg0: i32) -> (i32, i32) {
    %c0_i32 = arith.constant 0 : i32
    %c0_i32_0 = arith.constant 0 : i32
    %c0_i32_1 = arith.constant 0 : i32
    return %c0_i32, %c0_i32_0 : i32, i32
  }
  func.func @transform_7(%arg0: i32) -> (i32, i32) {
    %c0_i32 = arith.constant 0 : i32
    %c0_i32_0 = arith.constant 0 : i32
    %c0_i32_1 = arith.constant 0 : i32
    return %c0_i32, %c0_i32_0 : i32, i32
  }
  func.func @transform_8(%arg0: i32) -> (i32, i32) {
    %c0_i32 = arith.constant 0 : i32
    %c0_i32_0 = arith.constant 0 : i32
    %c0_i32_1 = arith.constant 0 : i32
    return %c0_i32, %c0_i32_0 : i32, i32
  }
  func.func @transform_9(%arg0: i32) -> (i32, i32) {
    %c0_i32 = arith.constant 0 : i32
    %c0_i32_0 = arith.constant 0 : i32
    %c0_i32_1 = arith.constant 0 : i32
    return %c0_i32, %c0_i32_0 : i32, i32
  }
  func.func @transform_10(%arg0: i32) -> (i32, i32) {
    %c0_i32 = arith.constant 0 : i32
    %c0_i32_0 = arith.constant 0 : i32
    %c0_i32_1 = arith.constant 0 : i32
    return %c0_i32, %c0_i32_0 : i32, i32
  }
  func.func @transform_11(%arg0: i32) -> (i32, i32) {
    %c0_i32 = arith.constant 0 : i32
    %c0_i32_0 = arith.constant 0 : i32
    return %arg0, %c0_i32 : i32, i32
  }
}

</mosaic_0001>

<llo_original>
// kernel: tpu_custom_call.1
$region0: #{tpu_custom_call.1}
  #allocation0 [shape = 'u32[]', space=smem, size = 0x4, offset = 0x4, fixed_abs, tag = 'smem constant byte address 0x4 - core index']
  #allocation1 [shape = 'u32[144,128]{1,0:T(1,128)}', space=vmem, size = 0x12000, scoped, tag = 'internal scratch']
  %s0 = inlined_call_operand.vmem [shape: bf16[8,8], index: 0, kind: input, shape index: {}]
  %s1 = inlined_call_operand.vmem [shape: bf16[8,4], index: 1, kind: input, shape index: {}]
  %s2 = inlined_call_operand.vmem [shape: bf16[8,4], index: 2, kind: input, shape index: {}]
  %s3 = inlined_call_operand.vmem [shape: bf16[8,256], index: 3, kind: input, shape index: {}]
  %s4 = inlined_call_operand.vmem [shape: bf16[4,256], index: 4, kind: input, shape index: {}]
  %s5 = inlined_call_operand.vmem [shape: bf16[4,256], index: 5, kind: input, shape index: {}]
  %s6 = inlined_call_operand.vmem [shape: f32[1,256], index: 6, kind: input, shape index: {}]
  %s7 = inlined_call_operand.hbm [shape: bf16[256,256], index: 7, kind: input, shape index: {}]
  %s8 = inlined_call_operand.vmem [shape: f32[1,256], index: 8, kind: input, shape index: {}]
  %s9 = inlined_call_operand.hbm [shape: bf16[256,128], index: 9, kind: input, shape index: {}]
  %s10 = inlined_call_operand.vmem [shape: f32[1,128], index: 10, kind: input, shape index: {}]
  %s11 = inlined_call_operand.hbm [shape: f32[8,128], index: 11, kind: output, shape index: {}]
  %s12 = sld [smem:[#allocation0]]
  $region62: #{tpu_custom_call.1} parent=0
    _
  %s14 = ssub.s32 1, %s12
  %s15 = scalar_select 0, %s14, %s12
  $region1: #{tpu_custom_call.1} parent=0
    #allocation2 [shape = 'u8[131072]{0}', space=vmem, size = 0x20000, scoped, tag = 'input window, operand 7, single buffered']
    #allocation3 [shape = 's32[1]{0}', space=sflag, size = 0x4, scoped, tag = 'scoped memory for tpu_custom_call.1']
    #allocation4 [shape = 's32[1]{0}', space=sflag, size = 0x4, scoped, tag = 'scoped memory for tpu_custom_call.1']
    #allocation5 [shape = 'u8[65536]{0}', space=vmem, size = 0x10000, scoped, tag = 'input window, operand 9, single buffered']
    #allocation6 [shape = 's32[1]{0}', space=sflag, size = 0x4, scoped, tag = 'scoped memory for tpu_custom_call.1']
    #allocation7 [shape = 'u8[4096]{0}', space=vmem, size = 0x1000, scoped, tag = 'output window, operand 0, single buffered']
    %16 = vsyncpa [#allocation3], 0
    %17 = vsyncpa [#allocation6], 0
    %18 = vsyncpa [#allocation4], 0
    // Predicated region
    $region2: #{tpu_custom_call.1} parent=1 // pred_check
      _
    $region3: #{tpu_custom_call.1} parent=1 // pred_check_branch
      %20 = sbr.rel (0) target = $region5
    $region4: #{tpu_custom_call.1} parent=1 // pred_region
      _
    $region5: #{tpu_custom_call.1} parent=1 // pred_fallthru
      _
    // Predicated region
    $region6: #{tpu_custom_call.1} parent=1 // pred_check
      _
    $region7: #{tpu_custom_call.1} parent=1 // pred_check_branch
      %22 = sbr.rel (0) target = $region9
    $region8: #{tpu_custom_call.1} parent=1 // pred_region
      _
    $region9: #{tpu_custom_call.1} parent=1 // pred_fallthru
      _
    // Predicated region
    $region10: #{tpu_custom_call.1} parent=1 // pred_check
      _
    $region11: #{tpu_custom_call.1} parent=1 // pred_check_branch
      %24 = sbr.rel (0) target = $region13
    $region12: #{tpu_custom_call.1} parent=1 // pred_region
      _
    $region13: #{tpu_custom_call.1} parent=1 // pred_fallthru
      _
    // Predicated region
    $region14: #{tpu_custom_call.1} parent=1 // pred_check
      _
    $region15: #{tpu_custom_call.1} parent=1 // pred_check_branch
      %26 = sbr.rel (0) target = $region17
    $region16: #{tpu_custom_call.1} parent=1 // pred_region
      _
    $region17: #{tpu_custom_call.1} parent=1 // pred_fallthru
      _
    // Predicated region
    $region18: #{tpu_custom_call.1} parent=1 // pred_check
      _
    $region19: #{tpu_custom_call.1} parent=1 // pred_check_branch
      %28 = sbr.rel (0) target = $region21
    $region20: #{tpu_custom_call.1} parent=1 // pred_region
      _
    $region21: #{tpu_custom_call.1} parent=1 // pred_fallthru
      _
    // Predicated region
    $region22: #{tpu_custom_call.1} parent=1 // pred_check
      _
    $region23: #{tpu_custom_call.1} parent=1 // pred_check_branch
      %30 = sbr.rel (0) target = $region25
    $region24: #{tpu_custom_call.1} parent=1 // pred_region
      _
    $region25: #{tpu_custom_call.1} parent=1 // pred_fallthru
      _
    // Predicated region
    $region26: #{tpu_custom_call.1} parent=1 // pred_check
      _
    $region27: #{tpu_custom_call.1} parent=1 // pred_check_branch
      %32 = sbr.rel (0) target = $region29
    $region28: #{tpu_custom_call.1} parent=1 // pred_region
      _
    $region29: #{tpu_custom_call.1} parent=1 // pred_fallthru
      _
    // Predicated region
    $region30: #{tpu_custom_call.1} parent=1 // pred_check
      _
    $region31: #{tpu_custom_call.1} parent=1 // pred_check_branch
      %34 = sbr.rel (0) target = $region33
    $region32: #{tpu_custom_call.1} parent=1 // pred_region
      %s36 = ssub.s32 4096, 4096
      %37 = vsyncadd [#allocation3], %s36
      %s38 = sshll.u32 [#allocation2], 4
      %s39 = int_to_ptr.vmem [resolvable:$true] %s38
      %44 = dma.hbm_to_vmem [thread:$0]  %s7, 4096, %s39, [#allocation3], 128, 128, 8
    $region33: #{tpu_custom_call.1} parent=1 // pred_fallthru
      _
    // Predicated region
    $region34: #{tpu_custom_call.1} parent=1 // pred_check
      _
    $region35: #{tpu_custom_call.1} parent=1 // pred_check_branch
      %46 = sbr.rel (0) target = $region37
    $region36: #{tpu_custom_call.1} parent=1 // pred_region
      _
    $region37: #{tpu_custom_call.1} parent=1 // pred_fallthru
      _
    // Predicated region
    $region38: #{tpu_custom_call.1} parent=1 // pred_check
      _
    $region39: #{tpu_custom_call.1} parent=1 // pred_check_branch
      %48 = sbr.rel (0) target = $region41
    $region40: #{tpu_custom_call.1} parent=1 // pred_region
      %s50 = ssub.s32 2048, 2048
      %51 = vsyncadd [#allocation6], %s50
      %s52 = sshll.u32 [#allocation5], 4
      %s53 = int_to_ptr.vmem [resolvable:$true] %s52
      %58 = dma.hbm_to_vmem [thread:$0]  %s9, 2048, %s53, [#allocation6], 64, 64, 4
    $region41: #{tpu_custom_call.1} parent=1 // pred_fallthru
      _
    // Predicated region
    $region42: #{tpu_custom_call.1} parent=1 // pred_check
      _
    $region43: #{tpu_custom_call.1} parent=1 // pred_check_branch
      %60 = sbr.rel (0) target = $region45
    $region44: #{tpu_custom_call.1} parent=1 // pred_region
      _
    $region45: #{tpu_custom_call.1} parent=1 // pred_fallthru
      _
    // Predicated region
    $region46: #{tpu_custom_call.1} parent=1 // pred_check
      _
    $region47: #{tpu_custom_call.1} parent=1 // pred_check_branch
      %62 = sbr.rel (0) target = $region49
    $region48: #{tpu_custom_call.1} parent=1 // pred_region
      %63 = dma.done [#allocation3], 4096
    $region49: #{tpu_custom_call.1} parent=1 // pred_fallthru
      _
    // Predicated region
    $region50: #{tpu_custom_call.1} parent=1 // pred_check
      _
    $region51: #{tpu_custom_call.1} parent=1 // pred_check_branch
      %65 = sbr.rel (0) target = $region53
    $region52: #{tpu_custom_call.1} parent=1 // pred_region
      %66 = dma.done [#allocation6], 2048
    $region53: #{tpu_custom_call.1} parent=1 // pred_fallthru
      _
    %v68 = vld [vmem:[%s0] sm:$0xf]
    %v69 = vld [vmem:[%s3] sm:$0xff]
    %v70 = vld [vmem:[%s1] sm:$0xf]
    %v71 = vld [vmem:[%s4] sm:$0xf]
    %v74 = vunpack.c.l.s4 1983009808
    %v75 = vunpack.c.0.s8 %v74
    %v76 = vlaneseq
    %v77 = vshrl.u32 %v76, 7
    %v78 = vsub.s32 %v75, %v77
    %v79 = vrot.slane %v71, %v78
    %v80 = vcombine.high %v79, %v79
    %vm81 = vcmask 31744
    %v83 = vsel %vm81, %v70, 0
    %vm85 = vcmask 1041408
    %v87 = vsel %vm85, %v79, 0
    %v90 = vsel %vm85, %v80, 0
    %92 = vmatprep.subr.bf16.mxu0 0
    %93 = vmatpush1.bf16.msra.mxu0 0
    %94 = vmatprep.subr.bf16.mxu0 0
    %95 = vmatpush1.bf16.msra.mxu0 0
    %96 = vmatprep.subr.bf16.mxu0 0
    %97 = vmatpush1.bf16.msra.mxu0 0
    %98 = vmatprep.subr.bf16.mxu0 0
    %99 = vmatpush1.bf16.msra.mxu0 0
    %100 = vmatprep.subr.bf16.mxu0 0
    %101 = vmatpush1.bf16.msra.mxu0 0
    %102 = vmatprep.subr.bf16.mxu0 0
    %103 = vmatpush1.bf16.msra.mxu0 0
    %104 = vmatprep.subr.bf16.mxu0 0
    %105 = vmatpush1.bf16.msra.mxu0 0
    %106 = vmatprep.subr.bf16.mxu0 %v90
    %107 = vmatpush1.bf16.msra.mxu0 %v87
    %108 = vmatprep.subr.bf16.mxu0 0
    %109 = vmatpush2.bf16.msra.mxu0 0
    %110 = vmatprep.subr.bf16.mxu0 0
    %111 = vmatpush2.bf16.msra.mxu0 0
    %112 = vmatprep.subr.bf16.mxu0 0
    %113 = vmatpush2.bf16.msra.mxu0 0
    %114 = vmatprep.subr.bf16.mxu0 0
    %115 = vmatpush2.bf16.msra.mxu0 0
    %116 = vmatprep.subr.bf16.mxu0 0
    %117 = vmatpush2.bf16.msra.mxu0 0
    %118 = vmatprep.subr.bf16.mxu0 0
    %119 = vmatpush2.bf16.msra.mxu0 0
    %120 = vmatprep.subr.bf16.mxu0 0
    %121 = vmatpush2.bf16.msra.mxu0 0
    %122 = vmatprep.subr.bf16.mxu0 0
    %123 = vmatpush2.bf16.msra.mxu0 0
    %124 = vmatprep.mubr.bf16.mxu0 0
    %125 = vmatmul.mubr.bf16.gmra.mxu0 %v83
    %v126 = vpop.f32.mrf.mxu0
    %v127 = vadd.f32 0.0, %v126
    %v128 = vpop.f32.mrf.mxu0
    %v129 = vadd.f32 0.0, %v128
    %v130 = vpop.f32.mrf.mxu0
    %v131 = vpop.f32.mrf.mxu0
    %132 = vdwg.mxu0
    %v134 = vunpack.c.l.b16 %v69
    %v135 = vunpack.c.h.b16 %v69
    %v136 = vpack.c.b16 %v134, %v134
    %v137 = vpack.c.b16 %v135, %v135
    %vm138 = vcmask 64512
    %v140 = vsel %vm138, %v68, 0
    %vm142 = vcmask 1043456
    %v144 = vsel %vm142, %v136, 0
    %v147 = vsel %vm142, %v137, 0
    %149 = vmatprep.subr.bf16.mxu0 0
    %150 = vmatpush1.bf16.msra.mxu0 0
    %151 = vmatprep.subr.bf16.mxu0 0
    %152 = vmatpush1.bf16.msra.mxu0 0
    %153 = vmatprep.subr.bf16.mxu0 0
    %154 = vmatpush1.bf16.msra.mxu0 0
    %155 = vmatprep.subr.bf16.mxu0 0
    %156 = vmatpush1.bf16.msra.mxu0 0
    %157 = vmatprep.subr.bf16.mxu0 0
    %158 = vmatpush1.bf16.msra.mxu0 0
    %159 = vmatprep.subr.bf16.mxu0 0
    %160 = vmatpush1.bf16.msra.mxu0 0
    %161 = vmatprep.subr.bf16.mxu0 0
    %162 = vmatpush1.bf16.msra.mxu0 0
    %163 = vmatprep.subr.bf16.mxu0 %v147
    %164 = vmatpush1.bf16.msra.mxu0 %v144
    %165 = vmatprep.subr.bf16.mxu0 0
    %166 = vmatpush2.bf16.msra.mxu0 0
    %167 = vmatprep.subr.bf16.mxu0 0
    %168 = vmatpush2.bf16.msra.mxu0 0
    %169 = vmatprep.subr.bf16.mxu0 0
    %170 = vmatpush2.bf16.msra.mxu0 0
    %171 = vmatprep.subr.bf16.mxu0 0
    %172 = vmatpush2.bf16.msra.mxu0 0
    %173 = vmatprep.subr.bf16.mxu0 0
    %174 = vmatpush2.bf16.msra.mxu0 0
    %175 = vmatprep.subr.bf16.mxu0 0
    %176 = vmatpush2.bf16.msra.mxu0 0
    %177 = vmatprep.subr.bf16.mxu0 0
    %178 = vmatpush2.bf16.msra.mxu0 0
    %179 = vmatprep.subr.bf16.mxu0 0
    %180 = vmatpush2.bf16.msra.mxu0 0
    %181 = vmatprep.mubr.bf16.mxu0 0
    %182 = vmatmul.mubr.bf16.gmra.mxu0 %v140
    %v183 = vpop.f32.mrf.mxu0
    %v184 = vadd.f32 %v127, %v183
    %v185 = vpop.f32.mrf.mxu0
    %v186 = vadd.f32 %v129, %v185
    %v187 = vpop.f32.mrf.mxu0
    %v188 = vpop.f32.mrf.mxu0
    %189 = vdwg.mxu0
    %v190 = vld [vmem:[%s2] sm:$0xf]
    %v191 = vld [vmem:[%s5] sm:$0xf]
    %v194 = vunpack.c.l.s4 1983009808
    %v195 = vunpack.c.0.s8 %v194
    %v196 = vlaneseq
    %v197 = vshrl.u32 %v196, 7
    %v198 = vsub.s32 %v195, %v197
    %v199 = vrot.slane %v191, %v198
    %v200 = vcombine.high %v199, %v199
    %v202 = vsel %vm81, %v190, 0
    %v205 = vsel %vm85, %v199, 0
    %v208 = vsel %vm85, %v200, 0
    %210 = vmatprep.subr.bf16.mxu0 0
    %211 = vmatpush1.bf16.msra.mxu0 0
    %212 = vmatprep.subr.bf16.mxu0 0
    %213 = vmatpush1.bf16.msra.mxu0 0
    %214 = vmatprep.subr.bf16.mxu0 0
    %215 = vmatpush1.bf16.msra.mxu0 0
    %216 = vmatprep.subr.bf16.mxu0 0
    %217 = vmatpush1.bf16.msra.mxu0 0
    %218 = vmatprep.subr.bf16.mxu0 0
    %219 = vmatpush1.bf16.msra.mxu0 0
    %220 = vmatprep.subr.bf16.mxu0 0
    %221 = vmatpush1.bf16.msra.mxu0 0
    %222 = vmatprep.subr.bf16.mxu0 0
    %223 = vmatpush1.bf16.msra.mxu0 0
    %224 = vmatprep.subr.bf16.mxu0 %v208
    %225 = vmatpush1.bf16.msra.mxu0 %v205
    %226 = vmatprep.subr.bf16.mxu0 0
    %227 = vmatpush2.bf16.msra.mxu0 0
    %228 = vmatprep.subr.bf16.mxu0 0
    %229 = vmatpush2.bf16.msra.mxu0 0
    %230 = vmatprep.subr.bf16.mxu0 0
    %231 = vmatpush2.bf16.msra.mxu0 0
    %232 = vmatprep.subr.bf16.mxu0 0
    %233 = vmatpush2.bf16.msra.mxu0 0
    %234 = vmatprep.subr.bf16.mxu0 0
    %235 = vmatpush2.bf16.msra.mxu0 0
    %236 = vmatprep.subr.bf16.mxu0 0
    %237 = vmatpush2.bf16.msra.mxu0 0
    %238 = vmatprep.subr.bf16.mxu0 0
    %239 = vmatpush2.bf16.msra.mxu0 0
    %240 = vmatprep.subr.bf16.mxu0 0
    %241 = vmatpush2.bf16.msra.mxu0 0
    %242 = vmatprep.mubr.bf16.mxu0 0
    %243 = vmatmul.mubr.bf16.gmra.mxu0 %v202
    %v244 = vpop.f32.mrf.mxu0
    %v245 = vadd.f32 0.0, %v244
    %v246 = vpop.f32.mrf.mxu0
    %v247 = vadd.f32 0.0, %v246
    %v248 = vpop.f32.mrf.mxu0
    %v249 = vpop.f32.mrf.mxu0
    %250 = vdwg.mxu0
    %v251 = vadd.f32 %v184, %v245
    %v252 = vadd.f32 %v186, %v247
    %v253 = vld [vmem:[%s6] sm:$0x3]
    %v255 = vlaneseq
    %v256 = vshrl.u32 %v255, 7
    %v257 = vsub.s32 0, %v256
    %v258 = vrot.slane %v253, %v257
    %v259 = vlaneseq
    %v260 = vshrl.u32 %v259, 7
    %v261 = vsub.s32 1, %v260
    %v262 = vrot.slane %v253, %v261
    %v265 = vadd.f32 %v251, %v258
    %v266 = vadd.f32 %v252, %v262
    %vm267 = vcmp.gt.f32.partialorder %v265, 0.0
    %vm268 = vcmp.gt.f32.partialorder %v266, 0.0
    %v269 = vmul.f32 %v265, 0.01
    %v270 = vmul.f32 %v266, 0.01
    %v271 = vsel %vm267, %v265, %v269
    %v272 = vsel %vm268, %v266, %v270
    %v273 = vpack.c.bf16 %v271, %v271
    %v274 = vpack.c.bf16 %v272, %v272
    %v275 = vld [vmem:[#allocation2] sm:$0xff]
    %v276 = vld [vmem:[#allocation2 + $0x8] sm:$0xff]
    %v277 = vld [vmem:[#allocation2 + $0x10] sm:$0xff]
    %v278 = vld [vmem:[#allocation2 + $0x18] sm:$0xff]
    %v279 = vld [vmem:[#allocation2 + $0x20] sm:$0xff]
    %v280 = vld [vmem:[#allocation2 + $0x28] sm:$0xff]
    %v281 = vld [vmem:[#allocation2 + $0x30] sm:$0xff]
    %v282 = vld [vmem:[#allocation2 + $0x38] sm:$0xff]
    %v283 = vld [vmem:[#allocation2 + $0x40] sm:$0xff]
    %v284 = vld [vmem:[#allocation2 + $0x48] sm:$0xff]
    %v285 = vld [vmem:[#allocation2 + $0x50] sm:$0xff]
    %v286 = vld [vmem:[#allocation2 + $0x58] sm:$0xff]
    %v287 = vld [vmem:[#allocation2 + $0x60] sm:$0xff]
    %v288 = vld [vmem:[#allocation2 + $0x68] sm:$0xff]
    %v289 = vld [vmem:[#allocation2 + $0x70] sm:$0xff]
    %v290 = vld [vmem:[#allocation2 + $0x78] sm:$0xff]
    %v291 = vld [vmem:[#allocation2 + $0x80] sm:$0xff]
    %v292 = vld [vmem:[#allocation2 + $0x88] sm:$0xff]
    %v293 = vld [vmem:[#allocation2 + $0x90] sm:$0xff]
    %v294 = vld [vmem:[#allocation2 + $0x98] sm:$0xff]
    %v295 = vld [vmem:[#allocation2 + $0xa0] sm:$0xff]
    %v296 = vld [vmem:[#allocation2 + $0xa8] sm:$0xff]
    %v297 = vld [vmem:[#allocation2 + $0xb0] sm:$0xff]
    %v298 = vld [vmem:[#allocation2 + $0xb8] sm:$0xff]
    %v299 = vld [vmem:[#allocation2 + $0xc0] sm:$0xff]
    %v300 = vld [vmem:[#allocation2 + $0xc8] sm:$0xff]
    %v301 = vld [vmem:[#allocation2 + $0xd0] sm:$0xff]
    %v302 = vld [vmem:[#allocation2 + $0xd8] sm:$0xff]
    %v303 = vld [vmem:[#allocation2 + $0xe0] sm:$0xff]
    %v304 = vld [vmem:[#allocation2 + $0xe8] sm:$0xff]
    %v305 = vld [vmem:[#allocation2 + $0xf0] sm:$0xff]
    %v306 = vld [vmem:[#allocation2 + $0xf8] sm:$0xff]
    %v307 = vld [vmem:[%s8] sm:$0x3]
    %v309 = vlaneseq
    %v310 = vshrl.u32 %v309, 7
    %v311 = vsub.s32 0, %v310
    %v312 = vrot.slane %v307, %v311
    %v313 = vlaneseq
    %v314 = vshrl.u32 %v313, 7
    %v315 = vsub.s32 1, %v314
    %v316 = vrot.slane %v307, %v315
    %v351 = vunpack.c.l.b16 %v275
    %v352 = vunpack.c.h.b16 %v275
    %v353 = vunpack.c.l.b16 %v276
    %v354 = vunpack.c.h.b16 %v276
    %v355 = vunpack.c.l.b16 %v277
    %v356 = vunpack.c.h.b16 %v277
    %v357 = vunpack.c.l.b16 %v278
    %v358 = vunpack.c.h.b16 %v278
    %v359 = vunpack.c.l.b16 %v279
    %v360 = vunpack.c.h.b16 %v279
    %v361 = vunpack.c.l.b16 %v280
    %v362 = vunpack.c.h.b16 %v280
    %v363 = vunpack.c.l.b16 %v281
    %v364 = vunpack.c.h.b16 %v281
    %v365 = vunpack.c.l.b16 %v282
    %v366 = vunpack.c.h.b16 %v282
    %v367 = vunpack.c.l.b16 %v283
    %v368 = vunpack.c.h.b16 %v283
    %v369 = vunpack.c.l.b16 %v284
    %v370 = vunpack.c.h.b16 %v284
    %v371 = vunpack.c.l.b16 %v285
    %v372 = vunpack.c.h.b16 %v285
    %v373 = vunpack.c.l.b16 %v286
    %v374 = vunpack.c.h.b16 %v286
    %v375 = vunpack.c.l.b16 %v287
    %v376 = vunpack.c.h.b16 %v287
    %v377 = vunpack.c.l.b16 %v288
    %v378 = vunpack.c.h.b16 %v288
    %v379 = vunpack.c.l.b16 %v289
    %v380 = vunpack.c.h.b16 %v289
    %v381 = vunpack.c.l.b16 %v290
    %v382 = vunpack.c.h.b16 %v290
    %v383 = vunpack.c.l.b16 %v291
    %v384 = vunpack.c.h.b16 %v291
    %v385 = vunpack.c.l.b16 %v292
    %v386 = vunpack.c.h.b16 %v292
    %v387 = vunpack.c.l.b16 %v293
    %v388 = vunpack.c.h.b16 %v293
    %v389 = vunpack.c.l.b16 %v294
    %v390 = vunpack.c.h.b16 %v294
    %v391 = vunpack.c.l.b16 %v295
    %v392 = vunpack.c.h.b16 %v295
    %v393 = vunpack.c.l.b16 %v296
    %v394 = vunpack.c.h.b16 %v296
    %v395 = vunpack.c.l.b16 %v297
    %v396 = vunpack.c.h.b16 %v297
    %v397 = vunpack.c.l.b16 %v298
    %v398 = vunpack.c.h.b16 %v298
    %v399 = vunpack.c.l.b16 %v299
    %v400 = vunpack.c.h.b16 %v299
    %v401 = vunpack.c.l.b16 %v300
    %v402 = vunpack.c.h.b16 %v300
    %v403 = vunpack.c.l.b16 %v301
    %v404 = vunpack.c.h.b16 %v301
    %v405 = vunpack.c.l.b16 %v302
    %v406 = vunpack.c.h.b16 %v302
    %v407 = vunpack.c.l.b16 %v303
    %v408 = vunpack.c.h.b16 %v303
    %v409 = vunpack.c.l.b16 %v304
    %v410 = vunpack.c.h.b16 %v304
    %v411 = vunpack.c.l.b16 %v305
    %v412 = vunpack.c.h.b16 %v305
    %v413 = vunpack.c.l.b16 %v306
    %v414 = vunpack.c.h.b16 %v306
    %v415 = vpack.c.b16 %v353, %v351
    %v416 = vpack.c.b16 %v354, %v352
    %v417 = vpack.c.b16 %v357, %v355
    %v418 = vpack.c.b16 %v358, %v356
    %v419 = vpack.c.b16 %v361, %v359
    %v420 = vpack.c.b16 %v362, %v360
    %v421 = vpack.c.b16 %v365, %v363
    %v422 = vpack.c.b16 %v366, %v364
    %v423 = vpack.c.b16 %v369, %v367
    %v424 = vpack.c.b16 %v370, %v368
    %v425 = vpack.c.b16 %v373, %v371
    %v426 = vpack.c.b16 %v374, %v372
    %v427 = vpack.c.b16 %v377, %v375
    %v428 = vpack.c.b16 %v378, %v376
    %v429 = vpack.c.b16 %v381, %v379
    %v430 = vpack.c.b16 %v382, %v380
    %v431 = vpack.c.b16 %v385, %v383
    %v432 = vpack.c.b16 %v386, %v384
    %v433 = vpack.c.b16 %v389, %v387
    %v434 = vpack.c.b16 %v390, %v388
    %v435 = vpack.c.b16 %v393, %v391
    %v436 = vpack.c.b16 %v394, %v392
    %v437 = vpack.c.b16 %v397, %v395
    %v438 = vpack.c.b16 %v398, %v396
    %v439 = vpack.c.b16 %v401, %v399
    %v440 = vpack.c.b16 %v402, %v400
    %v441 = vpack.c.b16 %v405, %v403
    %v442 = vpack.c.b16 %v406, %v404
    %v443 = vpack.c.b16 %v409, %v407
    %v444 = vpack.c.b16 %v410, %v408
    %v445 = vpack.c.b16 %v413, %v411
    %v446 = vpack.c.b16 %v414, %v412
    %479 = vmatprep.subr.bf16.mxu0 %v430
    %480 = vmatpush1.bf16.msra.mxu0 %v429
    %481 = vmatprep.subr.bf16.mxu0 %v428
    %482 = vmatpush1.bf16.msra.mxu0 %v427
    %483 = vmatprep.subr.bf16.mxu0 %v426
    %484 = vmatpush1.bf16.msra.mxu0 %v425
    %485 = vmatprep.subr.bf16.mxu0 %v424
    %486 = vmatpush1.bf16.msra.mxu0 %v423
    %487 = vmatprep.subr.bf16.mxu0 %v422
    %488 = vmatpush1.bf16.msra.mxu0 %v421
    %489 = vmatprep.subr.bf16.mxu0 %v420
    %490 = vmatpush1.bf16.msra.mxu0 %v419
    %491 = vmatprep.subr.bf16.mxu0 %v418
    %492 = vmatpush1.bf16.msra.mxu0 %v417
    %493 = vmatprep.subr.bf16.mxu0 %v416
    %494 = vmatpush1.bf16.msra.mxu0 %v415
    %495 = vmatprep.subr.bf16.mxu0 %v446
    %496 = vmatpush2.bf16.msra.mxu0 %v445
    %497 = vmatprep.subr.bf16.mxu0 %v444
    %498 = vmatpush2.bf16.msra.mxu0 %v443
    %499 = vmatprep.subr.bf16.mxu0 %v442
    %500 = vmatpush2.bf16.msra.mxu0 %v441
    %501 = vmatprep.subr.bf16.mxu0 %v440
    %502 = vmatpush2.bf16.msra.mxu0 %v439
    %503 = vmatprep.subr.bf16.mxu0 %v438
    %504 = vmatpush2.bf16.msra.mxu0 %v437
    %505 = vmatprep.subr.bf16.mxu0 %v436
    %506 = vmatpush2.bf16.msra.mxu0 %v435
    %507 = vmatprep.subr.bf16.mxu0 %v434
    %508 = vmatpush2.bf16.msra.mxu0 %v433
    %509 = vmatprep.subr.bf16.mxu0 %v432
    %510 = vmatpush2.bf16.msra.mxu0 %v431
    %511 = vmatprep.mubr.bf16.mxu0 %v274
    %512 = vmatmul.mubr.bf16.gmra.mxu0 %v273
    %v513 = vpop.f32.mrf.mxu0
    %v514 = vadd.f32 %v312, %v513
    %v515 = vpop.f32.mrf.mxu0
    %v516 = vadd.f32 %v316, %v515
    %v517 = vpop.f32.mrf.mxu0
    %v518 = vpop.f32.mrf.mxu0
    %519 = vdwg.mxu0
    %vm520 = vcmp.gt.f32.partialorder %v514, 0.0
    %vm521 = vcmp.gt.f32.partialorder %v516, 0.0
    %v522 = vmul.f32 %v514, 0.01
    %v523 = vmul.f32 %v516, 0.01
    %v524 = vsel %vm520, %v514, %v522
    %v525 = vsel %vm521, %v516, %v523
    %v526 = vpack.c.bf16 %v524, %v524
    %v527 = vpack.c.bf16 %v525, %v525
    %v528 = vld [vmem:[#allocation5] sm:$0xf]
    %v529 = vld [vmem:[#allocation5 + $0x4] sm:$0xf]
    %v530 = vld [vmem:[#allocation5 + $0x8] sm:$0xf]
    %v531 = vld [vmem:[#allocation5 + $0xc] sm:$0xf]
    %v532 = vld [vmem:[#allocation5 + $0x10] sm:$0xf]
    %v533 = vld [vmem:[#allocation5 + $0x14] sm:$0xf]
    %v534 = vld [vmem:[#allocation5 + $0x18] sm:$0xf]
    %v535 = vld [vmem:[#allocation5 + $0x1c] sm:$0xf]
    %v536 = vld [vmem:[#allocation5 + $0x20] sm:$0xf]
    %v537 = vld [vmem:[#allocation5 + $0x24] sm:$0xf]
    %v538 = vld [vmem:[#allocation5 + $0x28] sm:$0xf]
    %v539 = vld [vmem:[#allocation5 + $0x2c] sm:$0xf]
    %v540 = vld [vmem:[#allocation5 + $0x30] sm:$0xf]
    %v541 = vld [vmem:[#allocation5 + $0x34] sm:$0xf]
    %v542 = vld [vmem:[#allocation5 + $0x38] sm:$0xf]
    %v543 = vld [vmem:[#allocation5 + $0x3c] sm:$0xf]
    %v544 = vld [vmem:[#allocation5 + $0x40] sm:$0xf]
    %v545 = vld [vmem:[#allocation5 + $0x44] sm:$0xf]
    %v546 = vld [vmem:[#allocation5 + $0x48] sm:$0xf]
    %v547 = vld [vmem:[#allocation5 + $0x4c] sm:$0xf]
    %v548 = vld [vmem:[#allocation5 + $0x50] sm:$0xf]
    %v549 = vld [vmem:[#allocation5 + $0x54] sm:$0xf]
    %v550 = vld [vmem:[#allocation5 + $0x58] sm:$0xf]
    %v551 = vld [vmem:[#allocation5 + $0x5c] sm:$0xf]
    %v552 = vld [vmem:[#allocation5 + $0x60] sm:$0xf]
    %v553 = vld [vmem:[#allocation5 + $0x64] sm:$0xf]
    %v554 = vld [vmem:[#allocation5 + $0x68] sm:$0xf]
    %v555 = vld [vmem:[#allocation5 + $0x6c] sm:$0xf]
    %v556 = vld [vmem:[#allocation5 + $0x70] sm:$0xf]
    %v557 = vld [vmem:[#allocation5 + $0x74] sm:$0xf]
    %v558 = vld [vmem:[#allocation5 + $0x78] sm:$0xf]
    %v559 = vld [vmem:[#allocation5 + $0x7c] sm:$0xf]
    %v560 = vld [vmem:[%s10] sm:$0x1]
    %v562 = vlaneseq
    %v563 = vshrl.u32 %v562, 7
    %v564 = vsub.s32 0, %v563
    %v565 = vrot.slane %v560, %v564
    %v599 = vunpack.c.l.b16 %v528
    %v600 = vunpack.c.l.b16 %v529
    %v601 = vunpack.c.l.b16 %v530
    %v602 = vunpack.c.l.b16 %v531
    %v603 = vunpack.c.l.b16 %v532
    %v604 = vunpack.c.l.b16 %v533
    %v605 = vunpack.c.l.b16 %v534
    %v606 = vunpack.c.l.b16 %v535
    %v607 = vunpack.c.l.b16 %v536
    %v608 = vunpack.c.l.b16 %v537
    %v609 = vunpack.c.l.b16 %v538
    %v610 = vunpack.c.l.b16 %v539
    %v611 = vunpack.c.l.b16 %v540
    %v612 = vunpack.c.l.b16 %v541
    %v613 = vunpack.c.l.b16 %v542
    %v614 = vunpack.c.l.b16 %v543
    %v615 = vunpack.c.l.b16 %v544
    %v616 = vunpack.c.l.b16 %v545
    %v617 = vunpack.c.l.b16 %v546
    %v618 = vunpack.c.l.b16 %v547
    %v619 = vunpack.c.l.b16 %v548
    %v620 = vunpack.c.l.b16 %v549
    %v621 = vunpack.c.l.b16 %v550
    %v622 = vunpack.c.l.b16 %v551
    %v623 = vunpack.c.l.b16 %v552
    %v624 = vunpack.c.l.b16 %v553
    %v625 = vunpack.c.l.b16 %v554
    %v626 = vunpack.c.l.b16 %v555
    %v627 = vunpack.c.l.b16 %v556
    %v628 = vunpack.c.l.b16 %v557
    %v629 = vunpack.c.l.b16 %v558
    %v630 = vunpack.c.l.b16 %v559
    %v631 = vpack.c.b16 %v600, %v599
    %v632 = vpack.c.b16 %v602, %v601
    %v633 = vpack.c.b16 %v604, %v603
    %v634 = vpack.c.b16 %v606, %v605
    %v635 = vpack.c.b16 %v608, %v607
    %v636 = vpack.c.b16 %v610, %v609
    %v637 = vpack.c.b16 %v612, %v611
    %v638 = vpack.c.b16 %v614, %v613
    %v639 = vpack.c.b16 %v616, %v615
    %v640 = vpack.c.b16 %v618, %v617
    %v641 = vpack.c.b16 %v620, %v619
    %v642 = vpack.c.b16 %v622, %v621
    %v643 = vpack.c.b16 %v624, %v623
    %v644 = vpack.c.b16 %v626, %v625
    %v645 = vpack.c.b16 %v628, %v627
    %v646 = vpack.c.b16 %v630, %v629
    %663 = vmatprep.subr.bf16.mxu0 0
    %664 = vmatpush1.bf16.msra.mxu0 %v638
    %665 = vmatprep.subr.bf16.mxu0 0
    %666 = vmatpush1.bf16.msra.mxu0 %v637
    %667 = vmatprep.subr.bf16.mxu0 0
    %668 = vmatpush1.bf16.msra.mxu0 %v636
    %669 = vmatprep.subr.bf16.mxu0 0
    %670 = vmatpush1.bf16.msra.mxu0 %v635
    %671 = vmatprep.subr.bf16.mxu0 0
    %672 = vmatpush1.bf16.msra.mxu0 %v634
    %673 = vmatprep.subr.bf16.mxu0 0
    %674 = vmatpush1.bf16.msra.mxu0 %v633
    %675 = vmatprep.subr.bf16.mxu0 0
    %676 = vmatpush1.bf16.msra.mxu0 %v632
    %677 = vmatprep.subr.bf16.mxu0 0
    %678 = vmatpush1.bf16.msra.mxu0 %v631
    %679 = vmatprep.subr.bf16.mxu0 0
    %680 = vmatpush2.bf16.msra.mxu0 %v646
    %681 = vmatprep.subr.bf16.mxu0 0
    %682 = vmatpush2.bf16.msra.mxu0 %v645
    %683 = vmatprep.subr.bf16.mxu0 0
    %684 = vmatpush2.bf16.msra.mxu0 %v644
    %685 = vmatprep.subr.bf16.mxu0 0
    %686 = vmatpush2.bf16.msra.mxu0 %v643
    %687 = vmatprep.subr.bf16.mxu0 0
    %688 = vmatpush2.bf16.msra.mxu0 %v642
    %689 = vmatprep.subr.bf16.mxu0 0
    %690 = vmatpush2.bf16.msra.mxu0 %v641
    %691 = vmatprep.subr.bf16.mxu0 0
    %692 = vmatpush2.bf16.msra.mxu0 %v640
    %693 = vmatprep.subr.bf16.mxu0 0
    %694 = vmatpush2.bf16.msra.mxu0 %v639
    %695 = vmatprep.mubr.bf16.mxu0 %v527
    %696 = vmatmul.mubr.bf16.gmra.mxu0 %v526
    %v697 = vpop.f32.mrf.mxu0
    %v698 = vadd.f32 %v565, %v697
    %v699 = vpop.f32.mrf.mxu0
    %v700 = vpop.f32.mrf.mxu0
    %v701 = vpop.f32.mrf.mxu0
    %702 = vdwg.mxu0
    %703 = vst [vmem:[#allocation7] sm:$0xff] %v698
    // Predicated region
    $region54: #{tpu_custom_call.1} parent=1 // pred_check
      _
    $region55: #{tpu_custom_call.1} parent=1 // pred_check_branch
      %705 = sbr.rel (0) target = $region57
    $region56: #{tpu_custom_call.1} parent=1 // pred_region
      %s707 = ssub.s32 128, 128
      %708 = vsyncadd [#allocation4], %s707
      %s710 = sshll.u32 [#allocation7], 4
      %s711 = int_to_ptr.vmem [resolvable:$true] %s710
      %713 = dma.vmem_to_hbm [thread:$0]  %s711, 128, %s11, [#allocation4]
    $region57: #{tpu_custom_call.1} parent=1 // pred_fallthru
      _
    // Predicated region
    $region58: #{tpu_custom_call.1} parent=1 // pred_check
      _
    $region59: #{tpu_custom_call.1} parent=1 // pred_check_branch
      %715 = sbr.rel (0) target = $region61
    $region60: #{tpu_custom_call.1} parent=1 // pred_region
      %716 = dma.done [#allocation4], 128
    $region61: #{tpu_custom_call.1} parent=1 // pred_fallthru
      _
    %717 = vsyncpa [#allocation3], 1
    %718 = vsyncpa [#allocation6], 1
    %719 = vsyncpa [#allocation4], 1

</llo_original>
